<compile_context>
chip_gen: v7x
topology: tpu7x:2x2x1
jax: 0.10.0
libtpu: 0.0.40
codegen_flags: <defaults>
</compile_context>

<pallas_src>
import functools
import math
from typing import NamedTuple, Optional

import jax
import jax.numpy as jnp
from jax.experimental import pallas as pl
from jax.experimental.pallas import tpu as pltpu

LANE = 128
SUBLANE = 8


def _round_up(n, m):
    return ((n + m - 1) // m) * m


def _vmem_capacity_bytes():
    """Per-core VMEM capacity; conservative (v7x, 64 MiB) fallback if unqueryable."""
    try:
        info = pltpu.get_tpu_info()
        cap = getattr(info, "vmem_capacity_bytes", None)
        if cap:
            return int(cap)
    except Exception:
        pass
    return 64 * 1024 * 1024


# ---------------------------------------------------------------------------
# Kernel bodies.
# ---------------------------------------------------------------------------

def _second_layer(h, make_linear, compute_dtype, precision, wcl_ref, bcl_ref, out_ref):
    # h is f32 [tm, W_p]; bias already added, prefactors already folded into params.
    if not make_linear:
        h = jnp.maximum(h, 0.0)                         # ReLU in f32 on the VPU
    o = jnp.dot(h.astype(compute_dtype), wcl_ref[...],
                preferred_element_type=jnp.float32, precision=precision)
    out_ref[...] = (o + bcl_ref[...]).astype(out_ref.dtype)


def _mlp1_kernel_fused(make_linear, compute_dtype, precision,
                       x_ref, wfc_ref, bfc_ref, wcl_ref, bcl_ref, out_ref):
    # Whole input_size resident: one MXU matmul + bias, then the classifier layer.
    h = jnp.dot(x_ref[...], wfc_ref[...],
                preferred_element_type=jnp.float32, precision=precision)
    _second_layer(h + bfc_ref[...], make_linear, compute_dtype, precision,
                  wcl_ref, bcl_ref, out_ref)


def _mlp1_kernel_ktiled(make_linear, compute_dtype, precision,
                        x_ref, wfc_ref, bfc_ref, wcl_ref, bcl_ref, out_ref,
                        h_acc_ref):
    # input_size tiled along grid axis 1 ("arbitrary"); accumulate hidden in f32 VMEM.
    k = pl.program_id(1)
    prod = jnp.dot(x_ref[...], wfc_ref[...],
                   preferred_element_type=jnp.float32, precision=precision)

    @pl.when(k == 0)
    def _():
        h_acc_ref[...] = prod        # first K tile: overwrite (no zero-init pass)

    @pl.when(k > 0)
    def _():
        h_acc_ref[...] += prod

    @pl.when(k == pl.num_programs(1) - 1)
    def _():
        _second_layer(h_acc_ref[...] + bfc_ref[...], make_linear, compute_dtype,
                      precision, wcl_ref, bcl_ref, out_ref)


# ---------------------------------------------------------------------------
# Parameter preparation (do once, cache/reuse across forward calls).
# ---------------------------------------------------------------------------

class MLP1Params(NamedTuple):
    w_fc: jax.Array      # [K_pad, W_pad]  compute dtype, prefactor folded in
    b_fc: jax.Array      # [1, W_pad]      f32, prefactor folded in
    w_cl: jax.Array      # [W_pad, C_pad]  compute dtype, prefactor folded in
    b_cl: jax.Array      # [1, C_pad]      f32, prefactor folded in
    input_size: int
    width: int
    num_classes: int
    k_tile: int          # K tile; == K_pad when w_fc is fully VMEM resident


def mlp1_prepare_params(w_fc, b_fc, w_cl, b_cl, *,
                        prefactor_fc: float = 1.0, prefactor_cl: float = 1.0,
                        compute_dtype=jnp.bfloat16, k_tile: Optional[int] = None):
    """Pad / cast / prefactor-fold the MLP1 parameters (hoisted out of the forward).

    w_fc: [input_size, width]   (transposed vs. PyTorch's [width, input_size])
    w_cl: [width, num_classes]  (transposed)
    b_fc: [width] or None; b_cl: [num_classes] or None (add_bias=False).
    """
    K, W = w_fc.shape
    Wc, C = w_cl.shape
    assert Wc == W, "weight shapes inconsistent"
    f32 = jnp.float32
    cdt = jnp.dtype(compute_dtype)

    K_p = _round_up(K, LANE)
    W_p = _round_up(W, LANE)
    C_p = _round_up(C, LANE)          # lane-dense output (no masked partial stores)

    # Decide whether w_fc can stay fully VMEM-resident (single-buffered) or must
    # be streamed in K tiles, based on this generation's VMEM capacity.
    budget = int(_vmem_capacity_bytes() * 0.75)
    if k_tile is not None:
        tk = min(K_p, _round_up(int(k_tile), LANE))
    else:
        resident_bytes = (K_p * W_p + W_p * C_p) * cdt.itemsize
        if resident_bytes <= budget // 2:
            tk = K_p
        else:
            # Half the budget for weights: resident w_cl + double-buffered w_fc tiles.
            wfc_budget = max(budget // 2 - W_p * C_p * cdt.itemsize,
                             2 * LANE * W_p * cdt.itemsize)
            tk = max(LANE, min(K_p, (wfc_budget // (2 * W_p * cdt.itemsize))
                               // LANE * LANE))
    K_pad = _round_up(K_p, tk)

    if b_fc is None:
        b_fc = jnp.zeros((W,), f32)
    if b_cl is None:
        b_cl = jnp.zeros((C,), f32)

    pf_fc = float(prefactor_fc)
    pf_cl = float(prefactor_cl)

    # Zero padding is exact: padded rows/cols contribute nothing through the
    # matmuls, padded biases are zero, and ReLU(0) = 0.
    wfc_p = jnp.zeros((K_pad, W_p), cdt).at[:K, :W].set(
        (pf_fc * w_fc.astype(f32)).astype(cdt))
    bfc_p = jnp.zeros((1, W_p), f32).at[:, :W].set(
        pf_fc * jnp.reshape(b_fc, (1, W)).astype(f32))
    wcl_p = jnp.zeros((W_p, C_p), cdt).at[:W, :C].set(
        (pf_cl * w_cl.astype(f32)).astype(cdt))
    bcl_p = jnp.zeros((1, C_p), f32).at[:, :C].set(
        pf_cl * jnp.reshape(b_cl, (1, C)).astype(f32))

    return MLP1Params(wfc_p, bfc_p, wcl_p, bcl_p, int(K), int(W), int(C), int(tk))


# ---------------------------------------------------------------------------
# Forward.
# ---------------------------------------------------------------------------

def mlp1_forward(x, params: MLP1Params, *, make_linear=False, block_batch=512,
                 out_dtype=None, x_buffers=2, mxu_precision=None):
    """out = pf_cl * (act(pf_fc * (x @ Wfc + bfc)) @ Wcl + bcl), prefactors pre-folded.

    mxu_precision: optional jax.lax.Precision for the matmuls (e.g. HIGHEST for
    bit-tight f32 semantics when compute_dtype is float32).
    """
    B, K = x.shape
    assert K == params.input_size, "x feature dim does not match params"
    cdt = jnp.dtype(params.w_fc.dtype)
    K_pad, W_p = params.w_fc.shape
    _, C_p = params.w_cl.shape
    tk = params.k_tile
    n_k = K_pad // tk
    single_k = n_k == 1
    out_dt = jnp.dtype(x.dtype if out_dtype is None else out_dtype)

    # --- batch tiling --------------------------------------------------------
    B8 = _round_up(max(B, SUBLANE), SUBLANE)
    # Bound tm by the per-step activation footprint:
    #   f32 hidden (+ f32 accumulator if K-tiled) + compute-dtype recast + f32 out.
    act_budget = 12 * 1024 * 1024
    per_row = (4 + cdt.itemsize + (0 if single_k else 4)) * W_p + 4 * C_p
    tm_act = max(SUBLANE, (act_budget // per_row) // SUBLANE * SUBLANE)
    # Target several batch steps so DMA pipelines and megacore can shard axis 0.
    target_steps = 4
    tm = max(SUBLANE, min(int(block_batch), tm_act,
                          _round_up(pl.cdiv(B8, target_steps), SUBLANE)))
    B_p = _round_up(B8, 2 * tm)      # even number of batch tiles (>= 2)
    n_b = B_p // tm

    # --- pad + cast x (casting in the wrapper halves the streamed DMA bytes) --
    x_p = jnp.zeros((B_p, K_pad), cdt).at[:B, :K].set(x.astype(cdt))

    # --- VMEM budget (includes in-kernel intermediates) -----------------------
    budget = int(_vmem_capacity_bytes() * 0.75)   # headroom for Mosaic scratch
    wfc_bufs = 1 if single_k else 2
    vmem_estimate = (
        x_buffers * tm * tk * cdt.itemsize            # streamed x tiles
        + 2 * tm * C_p * out_dt.itemsize              # out tiles (double-buffered)
        + wfc_bufs * tk * W_p * cdt.itemsize          # w_fc (resident or streamed)
        + W_p * C_p * cdt.itemsize                    # w_cl (resident, 1 buffer)
        + (W_p + C_p) * 4                             # biases (resident, 1 buffer)
        + (0 if single_k else tm * W_p * 4)           # f32 accumulator scratch
        + tm * W_p * 4                                # f32 hidden intermediate
        + tm * W_p * cdt.itemsize                     # compute-dtype recast of hidden
        + tm * C_p * 4                                # f32 output before final cast
    )
    vmem_limit = int(min(max(int(vmem_estimate * 1.4), 16 * 1024 * 1024), budget))

    # --- advisory cost estimate for XLA's scheduler ---------------------------
    flops = 2 * B_p * (K_pad * W_p + W_p * C_p)
    bytes_accessed = (x_p.size * cdt.itemsize
                      + params.w_fc.size * cdt.itemsize
                      + params.w_cl.size * cdt.itemsize
                      + (params.b_fc.size + params.b_cl.size) * 4
                      + B_p * C_p * out_dt.itemsize)
    cost = pl.CostEstimate(flops=int(flops), transcendentals=0,
                           bytes_accessed=int(bytes_accessed))

    # --- specs ----------------------------------------------------------------
    def _spec(shape, index_map, buffers=None):
        if buffers is None:                      # default pipelining (2 buffers)
            return pl.BlockSpec(shape, index_map)
        return pl.BlockSpec(shape, index_map, pipeline_mode=pl.Buffered(buffers))

    in_specs = [
        _spec((tm, tk), lambda i, k: (i, k),
              None if x_buffers == 2 else x_buffers),       # x: streamed per tile
        _spec((tk, W_p), lambda i, k: (k, 0),
              1 if single_k else None),                      # w_fc: resident/streamed
        _spec((1, W_p), lambda i, k: (0, 0), 1),             # b_fc: resident, 1 buffer
        _spec((W_p, C_p), lambda i, k: (0, 0), 1),           # w_cl: resident, 1 buffer
        _spec((1, C_p), lambda i, k: (0, 0), 1),             # b_cl: resident, 1 buffer
    ]
    out_spec = pl.BlockSpec((tm, C_p), lambda i, k: (i, 0))

    if single_k:
        kernel = functools.partial(_mlp1_kernel_fused, bool(make_linear), cdt,
                                   mxu_precision)
        scratch_shapes = []
    else:
        kernel = functools.partial(_mlp1_kernel_ktiled, bool(make_linear), cdt,
                                   mxu_precision)
        scratch_shapes = [pltpu.VMEM((tm, W_p), jnp.float32)]

    out_p = pl.pallas_call(
        kernel,
        out_shape=jax.ShapeDtypeStruct((B_p, C_p), out_dt),
        grid_spec=pltpu.PrefetchScalarGridSpec(
            num_scalar_prefetch=0,
            grid=(n_b, n_k),
            in_specs=in_specs,
            out_specs=out_spec,
            scratch_shapes=scratch_shapes,
        ),
        compiler_params=pltpu.CompilerParams(
            dimension_semantics=("parallel", "arbitrary"),
            vmem_limit_bytes=vmem_limit),
        cost_estimate=cost,
    )(x_p, params.w_fc, params.b_fc, params.w_cl, params.b_cl)

    return out_p[:B, :params.num_classes]


if __name__ == "__main__":
    # Small shapes consistent with the module.
    batch = 8
    input_size = 64
    width = 32
    num_classes = 10

    # Deterministic init: 'normal', stddev = 1/sqrt(num_in * ctvt) with ctvt=1
    # (num_to_freeze=0); prefactors are 1.0 (NTK_style=False).
    key = jax.random.PRNGKey(0)
    kx, kwfc, kbfc, kwcl, kbcl, kx2, kwfc2, kbfc2 = jax.random.split(key, 8)

    std_fc = 1.0 / math.sqrt(input_size)
    std_cl = 1.0 / math.sqrt(width)

    x = jax.random.normal(kx, (batch, input_size), dtype=jnp.float32)
    # Weights stored transposed ([in, out]) relative to PyTorch's [out, in].
    w_fc = std_fc * jax.random.normal(kwfc, (input_size, width), dtype=jnp.float32)
    b_fc = std_fc * jax.random.normal(kbfc, (width,), dtype=jnp.float32)
    w_cl = std_cl * jax.random.normal(kwcl, (width, num_classes), dtype=jnp.float32)
    b_cl = std_cl * jax.random.normal(kbcl, (num_classes,), dtype=jnp.float32)

    # Plain-JAX f32 reference (prefactors = 1.0).
    h_ref = jnp.maximum(x @ w_fc + b_fc[None, :], 0.0)
    out_ref = h_ref @ w_cl + b_cl[None, :]

    # 1) f32 MXU operands, fused (single-K) kernel. Tight tolerance is valid at
    #    this small K; callers needing bit-tight f32 can pass
    #    mxu_precision=jax.lax.Precision.HIGHEST.
    params_f32 = mlp1_prepare_params(w_fc, b_fc, w_cl, b_cl,
                                     compute_dtype=jnp.float32)
    out_f32 = jax.block_until_ready(mlp1_forward(x, params_f32))
    assert out_f32.shape == (batch, num_classes)
    assert jnp.allclose(out_f32, out_ref, atol=1e-5, rtol=1e-5)

    # 2) Performance path: bf16 MXU operands (bf16 x / weights), f32 accumulate.
    params_bf16 = mlp1_prepare_params(w_fc, b_fc, w_cl, b_cl,
                                      compute_dtype=jnp.bfloat16)
    out_bf16 = jax.block_until_ready(mlp1_forward(x, params_bf16))
    assert out_bf16.shape == (batch, num_classes)
    assert jnp.allclose(out_bf16, out_ref, atol=5e-2, rtol=5e-2)

    # 3) K-tiled accumulator path (forced small k_tile) + NTK-style prefactor folding.
    input_size2 = 256
    pf_fc2 = 1.0 / math.sqrt(input_size2)
    pf_cl2 = 1.0 / math.sqrt(width)
    x2 = jax.random.normal(kx2, (batch, input_size2), dtype=jnp.float32)
    w_fc2 = jax.random.normal(kwfc2, (input_size2, width), dtype=jnp.float32)
    b_fc2 = jax.random.normal(kbfc2, (width,), dtype=jnp.float32)
    h_ref2 = jnp.maximum(pf_fc2 * (x2 @ w_fc2 + b_fc2[None, :]), 0.0)
    out_ref2 = pf_cl2 * (h_ref2 @ w_cl + b_cl[None, :])

    params_kt = mlp1_prepare_params(w_fc2, b_fc2, w_cl, b_cl,
                                    prefactor_fc=pf_fc2, prefactor_cl=pf_cl2,
                                    compute_dtype=jnp.float32, k_tile=128)
    out_kt = jax.block_until_ready(mlp1_forward(x2, params_kt))
    assert out_kt.shape == (batch, num_classes)
    assert jnp.allclose(out_kt, out_ref2, atol=1e-4, rtol=1e-4)

    print("KERNEL_OK")
</pallas_src>

<mosaic_0001>
module attributes {stable_mosaic.version = 11 : i64} {
  func.func @_mlp1_kernel_fused(%arg0: i32, %arg1: i32, %arg2: memref<8x128xf32, #tpu.memory_space<vmem>>, %arg3: memref<128x128xf32, #tpu.memory_space<vmem>>, %arg4: memref<1x128xf32, #tpu.memory_space<vmem>>, %arg5: memref<128x128xf32, #tpu.memory_space<vmem>>, %arg6: memref<1x128xf32, #tpu.memory_space<vmem>>, %arg7: memref<8x128xf32, #tpu.memory_space<vmem>>) attributes {dimension_semantics = [#tpu.dimension_semantics<parallel>, #tpu.dimension_semantics<arbitrary>], iteration_bounds = array<i64: 2, 1>, scalar_prefetch = 0 : i64, scratch_operands = 0 : i64, tpu.core_type = #tpu.core_type<tc>, window_params = [{transform_indices = @transform_0, window_bounds = array<i64: 8, 128>}, {pipeline_mode = #tpu.pipeline_mode<synchronous>, transform_indices = @transform_1, window_bounds = array<i64: 128, 128>}, {pipeline_mode = #tpu.pipeline_mode<synchronous>, transform_indices = @transform_2, window_bounds = array<i64: 1, 128>}, {pipeline_mode = #tpu.pipeline_mode<synchronous>, transform_indices = @transform_3, window_bounds = array<i64: 128, 128>}, {pipeline_mode = #tpu.pipeline_mode<synchronous>, transform_indices = @transform_4, window_bounds = array<i64: 1, 128>}, {transform_indices = @transform_5, window_bounds = array<i64: 8, 128>}]} {
    %c0 = arith.constant 0 : index
    %c0_0 = arith.constant 0 : index
    %0 = vector.load %arg2[%c0, %c0_0] : memref<8x128xf32, #tpu.memory_space<vmem>>, vector<8x128xf32>
    %c0_1 = arith.constant 0 : index
    %c0_2 = arith.constant 0 : index
    %1 = vector.load %arg3[%c0_1, %c0_2] : memref<128x128xf32, #tpu.memory_space<vmem>>, vector<128x128xf32>
    %cst = arith.constant dense<0.000000e+00> : vector<8x128xf32>
    %2 = tpu.matmul %0, %1, %cst {dimension_numbers = #tpu.dot_dimension_numbers<[1], [0], [0], [1], [0, 0, 1, 1], [], []>} : vector<8x128xf32>, vector<128x128xf32>, vector<8x128xf32> -> vector<8x128xf32>
    %c0_3 = arith.constant 0 : index
    %c0_4 = arith.constant 0 : index
    %3 = vector.load %arg4[%c0_3, %c0_4] : memref<1x128xf32, #tpu.memory_space<vmem>>, vector<1x128xf32>
    %4 = vector.broadcast %3 : vector<1x128xf32> to vector<8x128xf32>
    %5 = arith.addf %2, %4 : vector<8x128xf32>
    %cst_5 = arith.constant 0.000000e+00 : f32
    %6 = vector.broadcast %cst_5 : f32 to vector<8x128xf32>
    %7 = arith.maximumf %5, %6 : vector<8x128xf32>
    %c0_6 = arith.constant 0 : index
    %c0_7 = arith.constant 0 : index
    %8 = vector.load %arg5[%c0_6, %c0_7] : memref<128x128xf32, #tpu.memory_space<vmem>>, vector<128x128xf32>
    %cst_8 = arith.constant dense<0.000000e+00> : vector<8x128xf32>
    %9 = tpu.matmul %7, %8, %cst_8 {dimension_numbers = #tpu.dot_dimension_numbers<[1], [0], [0], [1], [0, 0, 1, 1], [], []>} : vector<8x128xf32>, vector<128x128xf32>, vector<8x128xf32> -> vector<8x128xf32>
    %c0_9 = arith.constant 0 : index
    %c0_10 = arith.constant 0 : index
    %10 = vector.load %arg6[%c0_9, %c0_10] : memref<1x128xf32, #tpu.memory_space<vmem>>, vector<1x128xf32>
    %11 = vector.broadcast %10 : vector<1x128xf32> to vector<8x128xf32>
    %12 = arith.addf %9, %11 : vector<8x128xf32>
    %c0_11 = arith.constant 0 : index
    %c0_12 = arith.constant 0 : index
    %13 = vector.load %arg7[%c0_11, %c0_12] : memref<8x128xf32, #tpu.memory_space<vmem>>, vector<8x128xf32>
    tpu.vector_store %arg7[%c0_11, %c0_12], %12 {strides = array<i32>} : memref<8x128xf32, #tpu.memory_space<vmem>>, vector<8x128xf32>,
    return
  }
  func.func @transform_0(%arg0: i32, %arg1: i32) -> (i32, i32) {
    %c0_i32 = arith.constant 0 : i32
    return %arg0, %arg1 : i32, i32
  }
  func.func @transform_1(%arg0: i32, %arg1: i32) -> (i32, i32) {
    %c0_i32 = arith.constant 0 : i32
    %c0_i32_0 = arith.constant 0 : i32
    return %arg1, %c0_i32 : i32, i32
  }
  func.func @transform_2(%arg0: i32, %arg1: i32) -> (i32, i32) {
    %c0_i32 = arith.constant 0 : i32
    %c0_i32_0 = arith.constant 0 : i32
    %c0_i32_1 = arith.constant 0 : i32
    return %c0_i32, %c0_i32_0 : i32, i32
  }
  func.func @transform_3(%arg0: i32, %arg1: i32) -> (i32, i32) {
    %c0_i32 = arith.constant 0 : i32
    %c0_i32_0 = arith.constant 0 : i32
    %c0_i32_1 = arith.constant 0 : i32
    return %c0_i32, %c0_i32_0 : i32, i32
  }
  func.func @transform_4(%arg0: i32, %arg1: i32) -> (i32, i32) {
    %c0_i32 = arith.constant 0 : i32
    %c0_i32_0 = arith.constant 0 : i32
    %c0_i32_1 = arith.constant 0 : i32
    return %c0_i32, %c0_i32_0 : i32, i32
  }
  func.func @transform_5(%arg0: i32, %arg1: i32) -> (i32, i32) {
    %c0_i32 = arith.constant 0 : i32
    %c0_i32_0 = arith.constant 0 : i32
    return %arg0, %c0_i32 : i32, i32
  }
}

</mosaic_0001>

<llo_original>
// kernel: tpu_custom_call.1
$region0: #{tpu_custom_call.1}
  #allocation0 [shape = 'u32[]', space=smem, size = 0x4, offset = 0x4, fixed_abs, tag = 'smem constant byte address 0x4 - core index']
  #allocation1 [shape = 'u32[144,128]{1,0:T(1,128)}', space=vmem, size = 0x12000, scoped, tag = 'internal scratch']
  %s0 = inlined_call_operand.hbm [shape: f32[16,128], index: 0, kind: input, shape index: {}]
  %s1 = inlined_call_operand.hbm [shape: f32[128,128], index: 1, kind: input, shape index: {}]
  %s2 = inlined_call_operand.vmem [shape: f32[1,128], index: 2, kind: input, shape index: {}]
  %s3 = inlined_call_operand.hbm [shape: f32[128,128], index: 3, kind: input, shape index: {}]
  %s4 = inlined_call_operand.vmem [shape: f32[1,128], index: 4, kind: input, shape index: {}]
  %s5 = inlined_call_operand.hbm [shape: f32[16,128], index: 5, kind: output, shape index: {}]
  %s6 = sld [smem:[#allocation0]]
  $region65: #{tpu_custom_call.1} parent=0
    _
  %s8 = ssub.s32 1, %s6
  %s9 = scalar_select 0, %s8, %s6
  $region1: #{tpu_custom_call.1} parent=0
    #allocation2 [shape = 'u8[8192]{0}', space=vmem, size = 0x2000, scoped, tag = 'input window, operand 0']
    #allocation3 [shape = 's32[2]{0}', space=sflag, size = 0x8, scoped, tag = 'scoped memory for tpu_custom_call.1']
    #allocation4 [shape = 's32[2]{0}', space=sflag, size = 0x8, scoped, tag = 'scoped memory for tpu_custom_call.1']
    #allocation5 [shape = 'u8[65536]{0}', space=vmem, size = 0x10000, scoped, tag = 'input window, operand 1, single buffered']
    #allocation6 [shape = 's32[1]{0}', space=sflag, size = 0x4, scoped, tag = 'scoped memory for tpu_custom_call.1']
    #allocation7 [shape = 'u8[65536]{0}', space=vmem, size = 0x10000, scoped, tag = 'input window, operand 3, single buffered']
    #allocation8 [shape = 'u8[8192]{0}', space=vmem, size = 0x2000, scoped, tag = 'output window, operand 0']
    %10 = vsyncpa [#allocation3], 0
    %s11 = scalar_lea.sflag [#allocation3], 1
    %12 = vsyncpa %s11, 0
    %13 = vsyncpa [#allocation6], 0
    %14 = vsyncpa [#allocation4], 0
    %s15 = scalar_lea.sflag [#allocation4], 1
    %16 = vsyncpa %s15, 0
    loop: start=0, step=1, limit=4
    $region2: #{tpu_custom_call.1} parent=1 // loop_pre_header
      _
    $region3: #{tpu_custom_call.1} parent=1 // loop_header
      %s18 = sphi 0, %s22
      %p19 = scmp.ge.s32.totalorder %s18, 4
      %s25 = sphi 0, %s37
      %s26 = sphi 0, %s33
      %s27 = sphi 0, %s25
      %s28 = sphi 0, %s26
      %s29 = sphi 0, %s27
      %s30 = sphi 0, %s28
      %s42 = sphi 0, %s44
      %s45 = sphi 0, %s42
      %s46 = sphi 0, %s45
      %s62 = sphi 0, %s46
      %s68 = sphi 0, %s70
      %s71 = sphi 0, %s68
      %s72 = sphi 0, %s71
      %s88 = sphi 0, %s72
      %s92 = sphi 0, %s92
      %s94 = sphi 0, %s92
      %s95 = sphi 0, %s94
      %s109 = sphi 0, %s95
      %s113 = sphi 0, %s113
      %s115 = sphi 0, %s113
      %s116 = sphi 0, %s115
      %s130 = sphi 0, %s116
      %s134 = sphi 0, %s134
      %s136 = sphi 0, %s134
      %s137 = sphi 0, %s136
      %s151 = sphi 0, %s137
      %s157 = sphi 0, %s159
      %s160 = sphi 0, %s157
      %s161 = sphi 0, %s160
      %s177 = sphi 0, %s161
    $region4: #{tpu_custom_call.1} parent=1 // loop_header_branch
      %21 = sbr.rel (%p19) target = $region8
    $region5: #{tpu_custom_call.1} parent=1 // loop_body
      %s23 = ssub.s32 %s18, 1
      %s24 = ssub.s32 %s18, 2
      %s31 = sadd.s32 1, %s26
      %p32 = scmp.ge.s32.totalorder %s31, 1
      %s33 = scalar_select %p32, 0, %s31
      %s34 = sadd.s32 1, %s25
      %s35 = scalar_select %p32, %s34, %s25
      %p36 = scmp.ge.s32.totalorder %s35, 2
      %s37 = scalar_select %p36, 0, %s35
      %s38 = ssub.s32 %s25, %s37
      %s39 = ssub.s32 %s26, %s33
      %s40 = sor.u32 %s38, %s39
      %p41 = scmp.eq.s32.totalorder %s40, 0
      %s43 = sadd.s32 %s42, 1
      %s44 = scalar_select %p41, %s42, %s43
      %p47 = pneg %p41
      %p48 = scmp.eq.s32.totalorder %s18, 1
      %p49 = por %p47, %p48
      %p50 = scmp.ne.s32.totalorder %s42, %s45
      %p51 = scmp.eq.s32.totalorder %s18, 0
      %p52 = por %p50, %p51
      %p53 = scmp.ne.s32.totalorder %s42, %s45
      %p54 = scmp.eq.s32.totalorder %s23, 1
      %p55 = por %p53, %p54
      %p56 = scmp.ne.s32.totalorder %s45, %s46
      %p57 = scmp.eq.s32.totalorder %s23, 0
      %p58 = por %p56, %p57
      %p59 = scmp.ne.s32.totalorder %s45, %s46
      %p60 = scmp.eq.s32.totalorder %s24, 1
      %p61 = por %p59, %p60
      %p63 = scmp.ne.s32.totalorder %s46, %s62
      %p64 = scmp.eq.s32.totalorder %s24, 0
      %p65 = por %p63, %p64
      %s66 = ssub.s32 %s26, %s33
      %p67 = scmp.eq.s32.totalorder %s66, 0
      %s69 = sadd.s32 %s68, 1
      %s70 = scalar_select %p67, %s68, %s69
      %p73 = pneg %p67
      %p74 = scmp.eq.s32.totalorder %s18, 1
      %p75 = por %p73, %p74
      %p76 = scmp.ne.s32.totalorder %s68, %s71
      %p77 = scmp.eq.s32.totalorder %s18, 0
      %p78 = por %p76, %p77
      %p79 = scmp.ne.s32.totalorder %s68, %s71
      %p80 = scmp.eq.s32.totalorder %s23, 1
      %p81 = por %p79, %p80
      %p82 = scmp.ne.s32.totalorder %s71, %s72
      %p83 = scmp.eq.s32.totalorder %s23, 0
      %p84 = por %p82, %p83
      %p85 = scmp.ne.s32.totalorder %s71, %s72
      %p86 = scmp.eq.s32.totalorder %s24, 1
      %p87 = por %p85, %p86
      %p89 = scmp.ne.s32.totalorder %s72, %s88
      %p90 = scmp.eq.s32.totalorder %s24, 0
      %p91 = por %p89, %p90
      %s93 = sadd.s32 %s92, 1
      %p96 = scmp.eq.s32.totalorder %s18, 1
      %p97 = scmp.ne.s32.totalorder %s92, %s94
      %p98 = scmp.eq.s32.totalorder %s18, 0
      %p99 = por %p97, %p98
      %p100 = scmp.ne.s32.totalorder %s92, %s94
      %p101 = scmp.eq.s32.totalorder %s23, 1
      %p102 = por %p100, %p101
      %p103 = scmp.ne.s32.totalorder %s94, %s95
      %p104 = scmp.eq.s32.totalorder %s23, 0
      %p105 = por %p103, %p104
      %p106 = scmp.ne.s32.totalorder %s94, %s95
      %p107 = scmp.eq.s32.totalorder %s24, 1
      %p108 = por %p106, %p107
      %p110 = scmp.ne.s32.totalorder %s95, %s109
      %p111 = scmp.eq.s32.totalorder %s24, 0
      %p112 = por %p110, %p111
      %s114 = sadd.s32 %s113, 1
      %p117 = scmp.eq.s32.totalorder %s18, 1
      %p118 = scmp.ne.s32.totalorder %s113, %s115
      %p119 = scmp.eq.s32.totalorder %s18, 0
      %p120 = por %p118, %p119
      %p121 = scmp.ne.s32.totalorder %s113, %s115
      %p122 = scmp.eq.s32.totalorder %s23, 1
      %p123 = por %p121, %p122
      %p124 = scmp.ne.s32.totalorder %s115, %s116
      %p125 = scmp.eq.s32.totalorder %s23, 0
      %p126 = por %p124, %p125
      %p127 = scmp.ne.s32.totalorder %s115, %s116
      %p128 = scmp.eq.s32.totalorder %s24, 1
      %p129 = por %p127, %p128
      %p131 = scmp.ne.s32.totalorder %s116, %s130
      %p132 = scmp.eq.s32.totalorder %s24, 0
      %p133 = por %p131, %p132
      %s135 = sadd.s32 %s134, 1
      %p138 = scmp.eq.s32.totalorder %s18, 1
      %p139 = scmp.ne.s32.totalorder %s134, %s136
      %p140 = scmp.eq.s32.totalorder %s18, 0
      %p141 = por %p139, %p140
      %p142 = scmp.ne.s32.totalorder %s134, %s136
      %p143 = scmp.eq.s32.totalorder %s23, 1
      %p144 = por %p142, %p143
      %p145 = scmp.ne.s32.totalorder %s136, %s137
      %p146 = scmp.eq.s32.totalorder %s23, 0
      %p147 = por %p145, %p146
      %p148 = scmp.ne.s32.totalorder %s136, %s137
      %p149 = scmp.eq.s32.totalorder %s24, 1
      %p150 = por %p148, %p149
      %p152 = scmp.ne.s32.totalorder %s137, %s151
      %p153 = scmp.eq.s32.totalorder %s24, 0
      %p154 = por %p152, %p153
      %s155 = ssub.s32 %s25, %s37
      %p156 = scmp.eq.s32.totalorder %s155, 0
      %s158 = sadd.s32 %s157, 1
      %s159 = scalar_select %p156, %s157, %s158
      %p162 = pneg %p156
      %p163 = scmp.eq.s32.totalorder %s18, 1
      %p164 = por %p162, %p163
      %p165 = scmp.ne.s32.totalorder %s157, %s160
      %p166 = scmp.eq.s32.totalorder %s18, 0
      %p167 = por %p165, %p166
      %p168 = scmp.ne.s32.totalorder %s157, %s160
      %p169 = scmp.eq.s32.totalorder %s23, 1
      %p170 = por %p168, %p169
      %p171 = scmp.ne.s32.totalorder %s160, %s161
      %p172 = scmp.eq.s32.totalorder %s23, 0
      %p173 = por %p171, %p172
      %p174 = scmp.ne.s32.totalorder %s160, %s161
      %p175 = scmp.eq.s32.totalorder %s24, 1
      %p176 = por %p174, %p175
      %p178 = scmp.ne.s32.totalorder %s161, %s177
      %p179 = scmp.eq.s32.totalorder %s24, 0
      %p180 = por %p178, %p179
      %p181 = scmp.le.s32.totalorder 1, %s18
      %p182 = scmp.lt.s32.totalorder %s18, 3
      %p183 = pnand %p181, %p182
      %p184 = pneg %p183
      // Predicated region
      $region9: #{tpu_custom_call.1} parent=5 // pred_check
        _
      $region10: #{tpu_custom_call.1} parent=5 // pred_check_branch
        %186 = sbr.rel (%p183) target = $region12
      $region11: #{tpu_custom_call.1} parent=5 // pred_region
        %s187 = ssub.s32 %s18, 1
        // Predicated region
        $region13: #{tpu_custom_call.1} parent=11 // pred_check
          %p188 = pneg %p84
        $region14: #{tpu_custom_call.1} parent=11 // pred_check_branch
          %190 = sbr.rel (%p188) target = $region16
        $region15: #{tpu_custom_call.1} parent=11 // pred_region
          %s191 = smul.u32 16, %s28
          %s193 = ssub.s32 2048, 2048
          %194 = vsyncadd [#allocation6], %s193
          %s195 = smul.addr %s191, 128
          %s196 = scalar_lea.hbm %s1, %s195
          %s197 = sshll.u32 [#allocation5], 4
          %s198 = int_to_ptr.vmem [resolvable:$true] %s197
          %203 = dma.hbm_to_vmem [thread:$0]  %s196, 2048, %s198, [#allocation6], 128, 128, 8
        $region16: #{tpu_custom_call.1} parent=11 // pred_fallthru
          _
        // Predicated region
        $region17: #{tpu_custom_call.1} parent=11 // pred_check
          %p204 = pneg %p105
        $region18: #{tpu_custom_call.1} parent=11 // pred_check_branch
          %206 = sbr.rel (%p204) target = $region20
        $region19: #{tpu_custom_call.1} parent=11 // pred_region
          _
        $region20: #{tpu_custom_call.1} parent=11 // pred_fallthru
          _
        // Predicated region
        $region21: #{tpu_custom_call.1} parent=11 // pred_check
          %p207 = pneg %p126
        $region22: #{tpu_custom_call.1} parent=11 // pred_check_branch
          %209 = sbr.rel (%p207) target = $region24
        $region23: #{tpu_custom_call.1} parent=11 // pred_region
          %s211 = ssub.s32 2048, 2048
          %212 = vsyncadd [#allocation6], %s211
          %s213 = sshll.u32 [#allocation7], 4
          %s214 = int_to_ptr.vmem [resolvable:$true] %s213
          %219 = dma.hbm_to_vmem [thread:$0]  %s3, 2048, %s214, [#allocation6], 128, 128, 8
        $region24: #{tpu_custom_call.1} parent=11 // pred_fallthru
          _
        // Predicated region
        $region25: #{tpu_custom_call.1} parent=11 // pred_check
          %p220 = pneg %p147
        $region26: #{tpu_custom_call.1} parent=11 // pred_check_branch
          %222 = sbr.rel (%p220) target = $region28
        $region27: #{tpu_custom_call.1} parent=11 // pred_region
          _
        $region28: #{tpu_custom_call.1} parent=11 // pred_fallthru
          _
      $region12: #{tpu_custom_call.1} parent=5 // pred_fallthru
        _
      %p223 = scmp.lt.s32.totalorder %s18, 2
      // Predicated region
      $region29: #{tpu_custom_call.1} parent=5 // pred_check
        %p224 = pneg %p223
      $region30: #{tpu_custom_call.1} parent=5 // pred_check_branch
        %226 = sbr.rel (%p224) target = $region32
      $region31: #{tpu_custom_call.1} parent=5 // pred_region
        // Predicated region
        $region33: #{tpu_custom_call.1} parent=31 // pred_check
          %p227 = pneg %p52
        $region34: #{tpu_custom_call.1} parent=31 // pred_check_branch
          %229 = sbr.rel (%p227) target = $region36
        $region35: #{tpu_custom_call.1} parent=31 // pred_region
          %s230 = sand.u32 %s42, 1
          %s231 = scalar_lea.sflag [#allocation3], %s230
          %s232 = sand.u32 %s42, 1
          %s233 = smul.addr %s232, 8
          %s234 = scalar_lea.vmem [#allocation2], %s233
          %s236 = ssub.s32 128, 128
          %237 = vsyncadd %s231, %s236
          %s238 = sadd.s32 %s26, %s25
          %s239 = smul.addr %s238, 128
          %s240 = scalar_lea.hbm %s0, %s239
          %s242 = sshll.u32 %s234, 4
          %s243 = int_to_ptr.vmem [resolvable:$true] %s242
          %245 = dma.hbm_to_vmem [thread:$0]  %s240, 128, %s243, %s231
        $region36: #{tpu_custom_call.1} parent=31 // pred_fallthru
          _
      $region32: #{tpu_custom_call.1} parent=5 // pred_fallthru
        _
      %p246 = scmp.le.s32.totalorder 1, %s18
      %p247 = scmp.lt.s32.totalorder %s18, 3
      %p248 = pnand %p246, %p247
      %p249 = pneg %p248
      // Predicated region
      $region37: #{tpu_custom_call.1} parent=5 // pred_check
        _
      $region38: #{tpu_custom_call.1} parent=5 // pred_check_branch
        %251 = sbr.rel (%p248) target = $region40
      $region39: #{tpu_custom_call.1} parent=5 // pred_region
        %s252 = ssub.s32 %s18, 1
        %s253 = sand.u32 %s45, 1
        %s254 = scalar_lea.sflag [#allocation3], %s253
        %s255 = sand.u32 %s45, 1
        %s256 = smul.addr %s255, 8
        %s257 = scalar_lea.vmem [#allocation2], %s256
        // Predicated region
        $region41: #{tpu_custom_call.1} parent=39 // pred_check
          %p258 = pneg %p58
        $region42: #{tpu_custom_call.1} parent=39 // pred_check_branch
          %260 = sbr.rel (%p258) target = $region44
        $region43: #{tpu_custom_call.1} parent=39 // pred_region
          %261 = dma.done %s254, 128
        $region44: #{tpu_custom_call.1} parent=39 // pred_fallthru
          _
        // Predicated region
        $region45: #{tpu_custom_call.1} parent=39 // pred_check
          %p262 = pneg %p84
        $region46: #{tpu_custom_call.1} parent=39 // pred_check_branch
          %264 = sbr.rel (%p262) target = $region48
        $region47: #{tpu_custom_call.1} parent=39 // pred_region
          %265 = dma.done [#allocation6], 2048
        $region48: #{tpu_custom_call.1} parent=39 // pred_fallthru
          _
        // Predicated region
        $region49: #{tpu_custom_call.1} parent=39 // pred_check
          %p266 = pneg %p126
        $region50: #{tpu_custom_call.1} parent=39 // pred_check_branch
          %268 = sbr.rel (%p266) target = $region52
        $region51: #{tpu_custom_call.1} parent=39 // pred_region
          %269 = dma.done [#allocation6], 2048
        $region52: #{tpu_custom_call.1} parent=39 // pred_fallthru
          _
        %s270 = sand.u32 %s45, 1
        %s271 = scalar_lea.sflag [#allocation3], %s270
        %s272 = sand.u32 %s45, 1
        %s273 = smul.addr %s272, 8
        %s274 = scalar_lea.vmem [#allocation2], %s273
        %p275 = pneg %p58
        %p276 = pneg %p55
        %p277 = pneg %p84
        %p278 = pneg %p81
        %p279 = pneg %p105
        %p280 = pneg %p102
        %p281 = pneg %p126
        %p282 = pneg %p123
        %p283 = pneg %p147
        %p284 = pneg %p144
        %p285 = pneg %p173
        %p286 = pneg %p170
        %s287 = sand.u32 %s160, 1
        %s288 = scalar_lea.sflag [#allocation4], %s287
        %s289 = sand.u32 %s160, 1
        %s290 = smul.addr %s289, 8
        %s291 = scalar_lea.vmem [#allocation8], %s290
        %s292 = smul.u32 16, %s28
        %v293 = vld [vmem:[%s257] sm:$0xff]
        %v294 = vld [vmem:[#allocation5] sm:$0xff]
        %v295 = vld [vmem:[#allocation5 + $0x8] sm:$0xff]
        %v296 = vld [vmem:[#allocation5 + $0x10] sm:$0xff]
        %v297 = vld [vmem:[#allocation5 + $0x18] sm:$0xff]
        %v298 = vld [vmem:[#allocation5 + $0x20] sm:$0xff]
        %v299 = vld [vmem:[#allocation5 + $0x28] sm:$0xff]
        %v300 = vld [vmem:[#allocation5 + $0x30] sm:$0xff]
        %v301 = vld [vmem:[#allocation5 + $0x38] sm:$0xff]
        %v302 = vld [vmem:[#allocation5 + $0x40] sm:$0xff]
        %v303 = vld [vmem:[#allocation5 + $0x48] sm:$0xff]
        %v304 = vld [vmem:[#allocation5 + $0x50] sm:$0xff]
        %v305 = vld [vmem:[#allocation5 + $0x58] sm:$0xff]
        %v306 = vld [vmem:[#allocation5 + $0x60] sm:$0xff]
        %v307 = vld [vmem:[#allocation5 + $0x68] sm:$0xff]
        %v308 = vld [vmem:[#allocation5 + $0x70] sm:$0xff]
        %v309 = vld [vmem:[#allocation5 + $0x78] sm:$0xff]
        %v310 = vld [vmem:[%s2] sm:$0x1]
        %v312 = vlaneseq
        %v313 = vshrl.u32 %v312, 7
        %v314 = vsub.s32 0, %v313
        %v315 = vrot.slane %v310, %v314
        %317 = vmatprep.subr.mxu0 0.0
        %318 = vmatpush1.msra.mxu0 %v294
        %319 = vmatprep.subr.mxu0 0.0
        %320 = vmatpush1.msra.mxu0 %v295
        %321 = vmatprep.subr.mxu0 0.0
        %322 = vmatpush1.msra.mxu0 %v296
        %323 = vmatprep.subr.mxu0 0.0
        %324 = vmatpush1.msra.mxu0 %v297
        %325 = vmatprep.subr.mxu0 0.0
        %326 = vmatpush1.msra.mxu0 %v298
        %327 = vmatprep.subr.mxu0 0.0
        %328 = vmatpush1.msra.mxu0 %v299
        %329 = vmatprep.subr.mxu0 0.0
        %330 = vmatpush1.msra.mxu0 %v300
        %331 = vmatprep.subr.mxu0 0.0
        %332 = vmatpush1.msra.mxu0 %v301
        %333 = vmatprep.subr.mxu0 0.0
        %334 = vmatpush1.msra.mxu0 %v302
        %335 = vmatprep.subr.mxu0 0.0
        %336 = vmatpush1.msra.mxu0 %v303
        %337 = vmatprep.subr.mxu0 0.0
        %338 = vmatpush1.msra.mxu0 %v304
        %339 = vmatprep.subr.mxu0 0.0
        %340 = vmatpush1.msra.mxu0 %v305
        %341 = vmatprep.subr.mxu0 0.0
        %342 = vmatpush1.msra.mxu0 %v306
        %343 = vmatprep.subr.mxu0 0.0
        %344 = vmatpush1.msra.mxu0 %v307
        %345 = vmatprep.subr.mxu0 0.0
        %346 = vmatpush1.msra.mxu0 %v308
        %347 = vmatprep.subr.mxu0 0.0
        %348 = vmatpush1.msra.mxu0 %v309
        %349 = vmatprep.subr.mxu0 0.0
        %350 = vmatpush1.msra.mxu0 0.0
        %351 = vmatprep.subr.mxu0 0.0
        %352 = vmatpush1.msra.mxu0 0.0
        %353 = vmatprep.subr.mxu0 0.0
        %354 = vmatpush1.msra.mxu0 0.0
        %355 = vmatprep.subr.mxu0 0.0
        %356 = vmatpush1.msra.mxu0 0.0
        %357 = vmatprep.subr.mxu0 0.0
        %358 = vmatpush1.msra.mxu0 0.0
        %359 = vmatprep.subr.mxu0 0.0
        %360 = vmatpush1.msra.mxu0 0.0
        %361 = vmatprep.subr.mxu0 0.0
        %362 = vmatpush1.msra.mxu0 0.0
        %363 = vmatprep.subr.mxu0 0.0
        %364 = vmatpush1.msra.mxu0 0.0
        %365 = vmatprep.subr.mxu0 0.0
        %366 = vmatpush1.msra.mxu0 0.0
        %367 = vmatprep.subr.mxu0 0.0
        %368 = vmatpush1.msra.mxu0 0.0
        %369 = vmatprep.subr.mxu0 0.0
        %370 = vmatpush1.msra.mxu0 0.0
        %371 = vmatprep.subr.mxu0 0.0
        %372 = vmatpush1.msra.mxu0 0.0
        %373 = vmatprep.subr.mxu0 0.0
        %374 = vmatpush1.msra.mxu0 0.0
        %375 = vmatprep.subr.mxu0 0.0
        %376 = vmatpush1.msra.mxu0 0.0
        %377 = vmatprep.subr.mxu0 0.0
        %378 = vmatpush1.msra.mxu0 0.0
        %379 = vmatprep.subr.mxu0 0.0
        %380 = vmatpush1.msra.mxu0 0.0
        %381 = vmatprep.mubr.f32.mxu0 0.0
        %382 = vmatmul.mubr.f32.gmra.mrb[0].mxu0 %v293
        %v383 = vpop.f32.mrb[0].mxu0
        %v384 = vadd.f32 %v315, %v383
        %v385 = vpop.f32.mrb[0].mxu0
        %386 = vdwg.mxu0
        %v387 = vmax.f32 %v384, 0.0
        %v388 = vld [vmem:[#allocation7] sm:$0xff]
        %v389 = vld [vmem:[#allocation7 + $0x8] sm:$0xff]
        %v390 = vld [vmem:[#allocation7 + $0x10] sm:$0xff]
        %v391 = vld [vmem:[#allocation7 + $0x18] sm:$0xff]
        %v392 = vld [vmem:[#allocation7 + $0x20] sm:$0xff]
        %v393 = vld [vmem:[#allocation7 + $0x28] sm:$0xff]
        %v394 = vld [vmem:[#allocation7 + $0x30] sm:$0xff]
        %v395 = vld [vmem:[#allocation7 + $0x38] sm:$0xff]
        %v396 = vld [vmem:[#allocation7 + $0x40] sm:$0xff]
        %v397 = vld [vmem:[#allocation7 + $0x48] sm:$0xff]
        %v398 = vld [vmem:[#allocation7 + $0x50] sm:$0xff]
        %v399 = vld [vmem:[#allocation7 + $0x58] sm:$0xff]
        %v400 = vld [vmem:[#allocation7 + $0x60] sm:$0xff]
        %v401 = vld [vmem:[#allocation7 + $0x68] sm:$0xff]
        %v402 = vld [vmem:[#allocation7 + $0x70] sm:$0xff]
        %v403 = vld [vmem:[#allocation7 + $0x78] sm:$0xff]
        %v404 = vld [vmem:[%s4] sm:$0x1]
        %v406 = vlaneseq
        %v407 = vshrl.u32 %v406, 7
        %v408 = vsub.s32 0, %v407
        %v409 = vrot.slane %v404, %v408
        %411 = vmatprep.subr.mxu0 0.0
        %412 = vmatpush1.msra.mxu0 %v388
        %413 = vmatprep.subr.mxu0 0.0
        %414 = vmatpush1.msra.mxu0 %v389
        %415 = vmatprep.subr.mxu0 0.0
        %416 = vmatpush1.msra.mxu0 %v390
        %417 = vmatprep.subr.mxu0 0.0
        %418 = vmatpush1.msra.mxu0 %v391
        %419 = vmatprep.subr.mxu0 0.0
        %420 = vmatpush1.msra.mxu0 %v392
        %421 = vmatprep.subr.mxu0 0.0
        %422 = vmatpush1.msra.mxu0 %v393
        %423 = vmatprep.subr.mxu0 0.0
        %424 = vmatpush1.msra.mxu0 %v394
        %425 = vmatprep.subr.mxu0 0.0
        %426 = vmatpush1.msra.mxu0 %v395
        %427 = vmatprep.subr.mxu0 0.0
        %428 = vmatpush1.msra.mxu0 %v396
        %429 = vmatprep.subr.mxu0 0.0
        %430 = vmatpush1.msra.mxu0 %v397
        %431 = vmatprep.subr.mxu0 0.0
        %432 = vmatpush1.msra.mxu0 %v398
        %433 = vmatprep.subr.mxu0 0.0
        %434 = vmatpush1.msra.mxu0 %v399
        %435 = vmatprep.subr.mxu0 0.0
        %436 = vmatpush1.msra.mxu0 %v400
        %437 = vmatprep.subr.mxu0 0.0
        %438 = vmatpush1.msra.mxu0 %v401
        %439 = vmatprep.subr.mxu0 0.0
        %440 = vmatpush1.msra.mxu0 %v402
        %441 = vmatprep.subr.mxu0 0.0
        %442 = vmatpush1.msra.mxu0 %v403
        %443 = vmatprep.subr.mxu0 0.0
        %444 = vmatpush1.msra.mxu0 0.0
        %445 = vmatprep.subr.mxu0 0.0
        %446 = vmatpush1.msra.mxu0 0.0
        %447 = vmatprep.subr.mxu0 0.0
        %448 = vmatpush1.msra.mxu0 0.0
        %449 = vmatprep.subr.mxu0 0.0
        %450 = vmatpush1.msra.mxu0 0.0
        %451 = vmatprep.subr.mxu0 0.0
        %452 = vmatpush1.msra.mxu0 0.0
        %453 = vmatprep.subr.mxu0 0.0
        %454 = vmatpush1.msra.mxu0 0.0
        %455 = vmatprep.subr.mxu0 0.0
        %456 = vmatpush1.msra.mxu0 0.0
        %457 = vmatprep.subr.mxu0 0.0
        %458 = vmatpush1.msra.mxu0 0.0
        %459 = vmatprep.subr.mxu0 0.0
        %460 = vmatpush1.msra.mxu0 0.0
        %461 = vmatprep.subr.mxu0 0.0
        %462 = vmatpush1.msra.mxu0 0.0
        %463 = vmatprep.subr.mxu0 0.0
        %464 = vmatpush1.msra.mxu0 0.0
        %465 = vmatprep.subr.mxu0 0.0
        %466 = vmatpush1.msra.mxu0 0.0
        %467 = vmatprep.subr.mxu0 0.0
        %468 = vmatpush1.msra.mxu0 0.0
        %469 = vmatprep.subr.mxu0 0.0
        %470 = vmatpush1.msra.mxu0 0.0
        %471 = vmatprep.subr.mxu0 0.0
        %472 = vmatpush1.msra.mxu0 0.0
        %473 = vmatprep.subr.mxu0 0.0
        %474 = vmatpush1.msra.mxu0 0.0
        %475 = vmatprep.mubr.f32.mxu0 0.0
        %476 = vmatmul.mubr.f32.gmra.mrb[0].mxu0 %v387
        %v477 = vpop.f32.mrb[0].mxu0
        %v478 = vadd.f32 %v409, %v477
        %v479 = vpop.f32.mrb[0].mxu0
        %480 = vdwg.mxu0
        %481 = vst [vmem:[%s291] sm:$0xff] %v478
        %s482 = sand.u32 %s160, 1
        %s483 = scalar_lea.sflag [#allocation4], %s482
        %s484 = sand.u32 %s160, 1
        %s485 = smul.addr %s484, 8
        %s486 = scalar_lea.vmem [#allocation8], %s485
        // Predicated region
        $region53: #{tpu_custom_call.1} parent=39 // pred_check
          %p487 = pneg %p170
        $region54: #{tpu_custom_call.1} parent=39 // pred_check_branch
          %489 = sbr.rel (%p487) target = $region56
        $region55: #{tpu_custom_call.1} parent=39 // pred_region
          %s491 = ssub.s32 128, 128
          %492 = vsyncadd %s483, %s491
          %s493 = smul.addr %s27, 128
          %s494 = scalar_lea.hbm %s5, %s493
          %s496 = sshll.u32 %s486, 4
          %s497 = int_to_ptr.vmem [resolvable:$true] %s496
          %499 = dma.vmem_to_hbm [thread:$0]  %s497, 128, %s494, %s483
        $region56: #{tpu_custom_call.1} parent=39 // pred_fallthru
          _
      $region40: #{tpu_custom_call.1} parent=5 // pred_fallthru
        _
      %p500 = scmp.le.s32.totalorder 2, %s18
      // Predicated region
      $region57: #{tpu_custom_call.1} parent=5 // pred_check
        %p501 = pneg %p500
      $region58: #{tpu_custom_call.1} parent=5 // pred_check_branch
        %503 = sbr.rel (%p501) target = $region60
      $region59: #{tpu_custom_call.1} parent=5 // pred_region
        %s504 = ssub.s32 %s18, 2
        // Predicated region
        $region61: #{tpu_custom_call.1} parent=59 // pred_check
          %p505 = pneg %p176
        $region62: #{tpu_custom_call.1} parent=59 // pred_check_branch
          %507 = sbr.rel (%p505) target = $region64
        $region63: #{tpu_custom_call.1} parent=59 // pred_region
          %s508 = sand.u32 %s161, 1
          %s509 = scalar_lea.sflag [#allocation4], %s508
          %s510 = sand.u32 %s161, 1
          %s511 = smul.addr %s510, 8
          %s512 = scalar_lea.vmem [#allocation8], %s511
          %513 = dma.done %s509, 128
        $region64: #{tpu_custom_call.1} parent=59 // pred_fallthru
          _
      $region60: #{tpu_custom_call.1} parent=5 // pred_fallthru
        _
    $region6: #{tpu_custom_call.1} parent=1 // loop_footer
      %s22 = sadd.s32 1, %s18
    $region7: #{tpu_custom_call.1} parent=1 // loop_footer_branch
      %17 = sbr.rel target = $region3
    $region8: #{tpu_custom_call.1} parent=1 // loop_exit
      _
    %514 = vsyncpa [#allocation3], 1
    %s515 = scalar_lea.sflag [#allocation3], 1
    %516 = vsyncpa %s515, 1
    %517 = vsyncpa [#allocation6], 1
    %518 = vsyncpa [#allocation4], 1
    %s519 = scalar_lea.sflag [#allocation4], 1
    %520 = vsyncpa %s519, 1

</llo_original>
